<compile_context>
chip_gen: v7x
topology: tpu7x:2x2x1
jax: 0.10.0
libtpu: 0.0.40
codegen_flags: <defaults>
</compile_context>

<pallas_src>
import functools

import jax
import jax.numpy as jnp
from jax.experimental import pallas as pl
from jax.experimental.pallas import tpu as pltpu

_EPS = 1e-8
_TARGET_BLOCK_BYTES = 2 * 1024 * 1024   # ~2 MiB per input block (fits v5e's
                                        # 16 MiB default scoped VMEM with
                                        # 2 inputs x 2 buffers + tiny acc)


def _round_up(x, m):
    return ((x + m - 1) // m) * m


def _num_tensorcores():
    # Only v7x has 2 TensorCores per chip; on v5e/v6e a second "core" grid
    # pass is purely redundant work, so collapse it there.
    try:
        kind = jax.devices()[0].device_kind.lower()
        if "v7" in kind or "tpu7" in kind or "7x" in kind:
            return 2
    except Exception:
        pass
    return 1


def _poisson_nll_kernel(x_ref, y_ref, out_ref, acc_ref, *,
                        total_rows, tile_rows, tiles_per_core, groups):
    c = pl.program_id(0)   # core split (parallel)
    i = pl.program_id(1)   # row-tile stream (arbitrary / reduction, innermost)

    @pl.when(i == 0)
    def _():
        acc_ref[...] = jnp.zeros_like(acc_ref)

    x = x_ref[...].astype(jnp.float32)
    y = y_ref[...].astype(jnp.float32)
    # poisson_nll_loss(log_input=False, full=False): elem = x - y * log(x + eps)
    elem = x - y * jnp.log(x + _EPS)

    row_start = (c * tiles_per_core + i) * tile_rows
    in_bounds = row_start + tile_rows <= total_rows

    def accumulate(e):
        if groups > 1:
            # Rows-of-8 groups align exactly with the (8,128) sublane tiling:
            # pure VPU vreg add tree, no relayout. The acc stays (8, W), so the
            # acc read-modify-write no longer competes with the x/y loads.
            e = e.reshape(groups, tile_rows // groups, e.shape[-1]).sum(axis=0)
        acc_ref[...] += e

    # Fast path: tile fully in range, no masking work on the hot path.
    @pl.when(in_bounds)
    def _():
        accumulate(elem)

    # Slow path: last partial tile and/or clamped duplicate (overhang) tiles.
    @pl.when(jnp.logical_not(in_bounds))
    def _():
        row_idx = jax.lax.broadcasted_iota(jnp.int32, elem.shape, 0) + row_start
        # Keep as a select (NOT mask-multiply): garbage rows can be NaN/Inf.
        accumulate(jnp.where(row_idx < total_rows, elem, 0.0))

    @pl.when(i == pl.num_programs(1) - 1)
    def _():
        # One-time epilogue: small (<=8 x W) cross-lane reduce + scalar store.
        out_ref[0, 0] = jnp.sum(acc_ref[...])


@functools.partial(jax.jit, static_argnames=("avg_type",))
def poisson_nll_loss(net_output, labels, avg_type="seq"):
    """JAX/Pallas equivalent of dgmvae PoissonNLLLoss.forward."""
    if avg_type != "seq":
        raise ValueError(f"Unknown avg_type: {avg_type}")

    b, t, n = net_output.shape
    flat_rows = b * t            # divisor for the 'seq' average
    total = b * t * n

    # Lane-dense 2-D view: W a multiple of 128 whenever possible; the kernel
    # runs on the first R_rows*W elements, and any ragged remainder (< 128
    # elements) is summed with plain jnp outside the kernel.
    if total % 128 == 0:
        for cand in (1024, 512, 256, 128):
            if total % cand == 0:
                W = cand
                break
    elif total >= 128:
        W = 128
    else:
        # TODO(synk): tiny (<128-element) inputs use a single lane-sparse row.
        W = total
    R_rows = total // W
    main = R_rows * W
    tail = total - main

    x_flat = net_output.reshape(-1)
    y_flat = labels.reshape(-1)
    x = x_flat[:main].reshape(R_rows, W)
    y = y_flat[:main].reshape(R_rows, W)

    desired_cores = _num_tensorcores()

    # Dtype-aware block sizing: ~_TARGET_BLOCK_BYTES per input block, rows a
    # multiple of 8 sublanes (sized by the wider input dtype to bound VMEM).
    itemsize = max(net_output.dtype.itemsize, labels.dtype.itemsize)
    target_rows = max(8, (_TARGET_BLOCK_BYTES // (W * itemsize)) // 8 * 8)

    if R_rows <= 8:
        tile_rows = R_rows                       # single full-extent tile
    else:
        tile_rows = min(target_rows, _round_up(pl.cdiv(R_rows, desired_cores), 8))
        if tile_rows >= R_rows:
            tile_rows = R_rows                   # full extent is always legal

    num_tiles = pl.cdiv(R_rows, tile_rows)
    num_cores = min(desired_cores, num_tiles)    # collapse useless core axis
    tiles_per_core = pl.cdiv(num_tiles, num_cores)
    grid = (num_cores, tiles_per_core)

    groups = tile_rows // 8 if (tile_rows % 8 == 0 and tile_rows > 8) else 1
    acc_rows = tile_rows // groups

    def in_index_map(c, i):
        # Clamp so every DMA stays in-bounds; overhang tiles are masked in-kernel.
        return (jnp.minimum(c * tiles_per_core + i, num_tiles - 1), 0)

    kernel = functools.partial(
        _poisson_nll_kernel,
        total_rows=R_rows, tile_rows=tile_rows,
        tiles_per_core=tiles_per_core, groups=groups)

    bytes_in = main * (net_output.dtype.itemsize + labels.dtype.itemsize)
    cost = pl.CostEstimate(flops=4 * main, transcendentals=main,
                           bytes_accessed=bytes_in + num_cores * 4)

    partials = pl.pallas_call(
        kernel,
        out_shape=jax.ShapeDtypeStruct((num_cores, 1), jnp.float32),
        grid_spec=pltpu.PrefetchScalarGridSpec(
            num_scalar_prefetch=0,
            grid=grid,
            in_specs=[
                pl.BlockSpec((tile_rows, W), in_index_map),
                pl.BlockSpec((tile_rows, W), in_index_map),
            ],
            out_specs=pl.BlockSpec((1, 1), lambda c, i: (c, 0),
                                   memory_space=pltpu.SMEM),
            scratch_shapes=[pltpu.VMEM((acc_rows, W), jnp.float32)],
        ),
        # TODO(synk): on v7x, if xprof shows one idle TensorCore, switch to
        # dimension_semantics=(pltpu.CORE_PARALLEL, pltpu.ARBITRARY).
        compiler_params=pltpu.CompilerParams(
            dimension_semantics=("parallel", "arbitrary")),
        cost_estimate=cost,
    )(x, y)

    loss = jnp.sum(partials)
    if tail:
        xt = x_flat[main:].astype(jnp.float32)
        yt = y_flat[main:].astype(jnp.float32)
        loss = loss + jnp.sum(xt - yt * jnp.log(xt + _EPS))

    # avg_type == 'seq': divide by the flattened first dim (batch * t).
    return loss / jnp.float32(flat_rows)


def _reference(net_output, labels):
    x = net_output.reshape(-1, net_output.shape[-1]).astype(jnp.float32)
    y = labels.reshape(-1, labels.shape[-1]).astype(jnp.float32)
    loss = jnp.sum(x - y * jnp.log(x + _EPS))
    return loss / x.shape[0]


if __name__ == "__main__":
    key = jax.random.PRNGKey(0)
    k1, k2 = jax.random.split(key)

    batch, t, neuron = 2, 8, 32
    # Non-negative Poisson rates (means) and integer-valued spike counts.
    net_output = jax.nn.softplus(
        jax.random.normal(k1, (batch, t, neuron), dtype=jnp.float32))
    labels = jax.random.poisson(k2, lam=1.5, shape=(batch, t, neuron)
                                ).astype(jnp.float32)

    loss = poisson_nll_loss(net_output, labels)
    loss = jax.block_until_ready(loss)

    ref = _reference(net_output, labels)
    assert jnp.allclose(loss, ref, rtol=1e-5, atol=1e-5), (loss, ref)

    print("KERNEL_OK")
</pallas_src>

<mosaic_0001>
module attributes {stable_mosaic.version = 11 : i64} {
  func.func @_poisson_nll_kernel(%arg0: i32, %arg1: i32, %arg2: memref<1x512xf32, #tpu.memory_space<vmem>>, %arg3: memref<1x512xf32, #tpu.memory_space<vmem>>, %arg4: memref<1x1xf32, #tpu.memory_space<smem>>, %arg5: memref<1x512xf32, #tpu.memory_space<vmem>>) attributes {dimension_semantics = [#tpu.dimension_semantics<parallel>, #tpu.dimension_semantics<arbitrary>], iteration_bounds = array<i64: 1, 1>, scalar_prefetch = 0 : i64, scratch_operands = 1 : i64, tpu.core_type = #tpu.core_type<tc>, window_params = [{transform_indices = @transform_0, window_bounds = array<i64: 1, 512>}, {transform_indices = @transform_1, window_bounds = array<i64: 1, 512>}, {transform_indices = @transform_2, window_bounds = array<i64: 1, 1>}]} {
    %c0_i32 = arith.constant 0 : i32
    %0 = arith.cmpi eq, %arg1, %c0_i32 : i32
    %1 = arith.extui %0 : i1 to i32
    %c0_i32_0 = arith.constant 0 : i32
    %2 = arith.cmpi ne, %1, %c0_i32_0 : i32
    scf.if %2 {
      %cst_11 = arith.constant 0.000000e+00 : f32
      %23 = vector.broadcast %cst_11 : f32 to vector<1x512xf32>
      %c0_12 = arith.constant 0 : index
      %c0_13 = arith.constant 0 : index
      %24 = vector.load %arg5[%c0_12, %c0_13] : memref<1x512xf32, #tpu.memory_space<vmem>>, vector<1x512xf32>
      tpu.vector_store %arg5[%c0_12, %c0_13], %23 {strides = array<i32>} : memref<1x512xf32, #tpu.memory_space<vmem>>, vector<1x512xf32>,
    } else {
    }
    %c0 = arith.constant 0 : index
    %c0_1 = arith.constant 0 : index
    %3 = vector.load %arg2[%c0, %c0_1] : memref<1x512xf32, #tpu.memory_space<vmem>>, vector<1x512xf32>
    %c0_2 = arith.constant 0 : index
    %c0_3 = arith.constant 0 : index
    %4 = vector.load %arg3[%c0_2, %c0_3] : memref<1x512xf32, #tpu.memory_space<vmem>>, vector<1x512xf32>
    %cst = arith.constant 9.99999993E-9 : f32
    %5 = vector.broadcast %cst : f32 to vector<1x512xf32>
    %6 = arith.addf %3, %5 : vector<1x512xf32>
    %7 = math.log %6 : vector<1x512xf32>
    %8 = arith.mulf %4, %7 : vector<1x512xf32>
    %9 = arith.subf %3, %8 : vector<1x512xf32>
    %c1_i32 = arith.constant 1 : i32
    %10 = arith.muli %arg0, %c1_i32 : i32
    %11 = arith.addi %10, %arg1 : i32
    %c1_i32_4 = arith.constant 1 : i32
    %12 = arith.muli %11, %c1_i32_4 : i32
    %c1_i32_5 = arith.constant 1 : i32
    %13 = arith.addi %12, %c1_i32_5 : i32
    %c1_i32_6 = arith.constant 1 : i32
    %14 = arith.cmpi sle, %13, %c1_i32_6 : i32
    %15 = arith.extui %14 : i1 to i32
    %c0_i32_7 = arith.constant 0 : i32
    %16 = arith.cmpi ne, %15, %c0_i32_7 : i32
    scf.if %16 {
      %c0_11 = arith.constant 0 : index
      %c0_12 = arith.constant 0 : index
      %23 = vector.load %arg5[%c0_11, %c0_12] : memref<1x512xf32, #tpu.memory_space<vmem>>, vector<1x512xf32>
      %24 = arith.addf %23, %9 : vector<1x512xf32>
      %c0_13 = arith.constant 0 : index
      %c0_14 = arith.constant 0 : index
      %25 = vector.load %arg5[%c0_13, %c0_14] : memref<1x512xf32, #tpu.memory_space<vmem>>, vector<1x512xf32>
      tpu.vector_store %arg5[%c0_13, %c0_14], %24 {strides = array<i32>} : memref<1x512xf32, #tpu.memory_space<vmem>>, vector<1x512xf32>,
    } else {
    }
    %true = arith.constant true
    %17 = arith.xori %14, %true : i1
    %18 = arith.extui %17 : i1 to i32
    %c0_i32_8 = arith.constant 0 : i32
    %19 = arith.cmpi ne, %18, %c0_i32_8 : i32
    scf.if %19 {
      %23 = tpu.iota {dimensions = array<i32: 0>} : vector<1x512xi32>
      %24 = vector.broadcast %12 : i32 to vector<1x512xi32>
      %25 = arith.addi %23, %24 : vector<1x512xi32>
      %c1_i32_11 = arith.constant 1 : i32
      %26 = vector.broadcast %c1_i32_11 : i32 to vector<1x512xi32>
      %27 = arith.cmpi slt, %25, %26 : vector<1x512xi32>
      %cst_12 = arith.constant 0.000000e+00 : f32
      %28 = vector.broadcast %cst_12 : f32 to vector<1x512xf32>
      %29 = arith.select %27, %9, %28 : vector<1x512xi1>, vector<1x512xf32>
      %c0_13 = arith.constant 0 : index
      %c0_14 = arith.constant 0 : index
      %30 = vector.load %arg5[%c0_13, %c0_14] : memref<1x512xf32, #tpu.memory_space<vmem>>, vector<1x512xf32>
      %31 = arith.addf %30, %29 : vector<1x512xf32>
      %c0_15 = arith.constant 0 : index
      %c0_16 = arith.constant 0 : index
      %32 = vector.load %arg5[%c0_15, %c0_16] : memref<1x512xf32, #tpu.memory_space<vmem>>, vector<1x512xf32>
      tpu.vector_store %arg5[%c0_15, %c0_16], %31 {strides = array<i32>} : memref<1x512xf32, #tpu.memory_space<vmem>>, vector<1x512xf32>,
    } else {
    }
    %c0_i32_9 = arith.constant 0 : i32
    %20 = arith.cmpi eq, %arg1, %c0_i32_9 : i32
    %21 = arith.extui %20 : i1 to i32
    %c0_i32_10 = arith.constant 0 : i32
    %22 = arith.cmpi ne, %21, %c0_i32_10 : i32
    scf.if %22 {
      %c0_11 = arith.constant 0 : index
      %c0_12 = arith.constant 0 : index
      %23 = vector.load %arg5[%c0_11, %c0_12] : memref<1x512xf32, #tpu.memory_space<vmem>>, vector<1x512xf32>
      %24 = vector.shape_cast %23 : vector<1x512xf32> to vector<1x1x512xf32>
      %cst_13 = arith.constant dense<0.000000e+00> : vector<1xf32>
      %25 = vector.multi_reduction <add>, %24, %cst_13 [1, 2] : vector<1x1x512xf32> to vector<1xf32>
      %26 = vector.shape_cast %25 : vector<1xf32> to vector<1x1x1xf32>
      %27 = vector.extract %26[0, 0, 0] : f32 from vector<1x1x1xf32>
      %c0_14 = arith.constant 0 : index
      %c0_15 = arith.constant 0 : index
      %28 = memref.load %arg4[%c0_14, %c0_15] : memref<1x1xf32, #tpu.memory_space<smem>>
      memref.store %27, %arg4[%c0_14, %c0_15] : memref<1x1xf32, #tpu.memory_space<smem>>
    } else {
    }
    return
  }
  func.func @transform_0(%arg0: i32, %arg1: i32) -> (i32, i32) {
    %c1_i32 = arith.constant 1 : i32
    %0 = arith.muli %arg0, %c1_i32 : i32
    %1 = arith.addi %0, %arg1 : i32
    %c0_i32 = arith.constant 0 : i32
    %2 = arith.minsi %1, %c0_i32 : i32
    %c0_i32_0 = arith.constant 0 : i32
    %c0_i32_1 = arith.constant 0 : i32
    return %2, %c0_i32_0 : i32, i32
  }
  func.func @transform_1(%arg0: i32, %arg1: i32) -> (i32, i32) {
    %c1_i32 = arith.constant 1 : i32
    %0 = arith.muli %arg0, %c1_i32 : i32
    %1 = arith.addi %0, %arg1 : i32
    %c0_i32 = arith.constant 0 : i32
    %2 = arith.minsi %1, %c0_i32 : i32
    %c0_i32_0 = arith.constant 0 : i32
    %c0_i32_1 = arith.constant 0 : i32
    return %2, %c0_i32_0 : i32, i32
  }
  func.func @transform_2(%arg0: i32, %arg1: i32) -> (i32, i32) {
    %c0_i32 = arith.constant 0 : i32
    %c0_i32_0 = arith.constant 0 : i32
    return %arg0, %c0_i32 : i32, i32
  }
}

</mosaic_0001>

<llo_original>
// kernel: poisson_nll_loss.1
$region0: #{poisson_nll_loss.1}
  #allocation0 [shape = 'u32[]', space=smem, size = 0x4, offset = 0x4, fixed_abs, tag = 'smem constant byte address 0x4 - core index']
  #allocation1 [shape = 'u32[144,128]{1,0:T(1,128)}', space=vmem, size = 0x12000, scoped, tag = 'internal scratch']
  #allocation2 [shape = 'f32[1,512]{1,0:T(1,128)}', space=vmem, size = 0x800, scoped, tag = 'scratch operand']
  %s0 = inlined_call_operand.vmem [shape: f32[1,512], index: 0, kind: input, shape index: {}]
  %s1 = inlined_call_operand.vmem [shape: f32[1,512], index: 1, kind: input, shape index: {}]
  %s2 = inlined_call_operand.hbm [shape: f32[1,1], index: 2, kind: output, shape index: {}]
  %s3 = sld [smem:[#allocation0]]
  $region34: #{poisson_nll_loss.1} parent=0
    _
  %s5 = ssub.s32 1, %s3
  %s6 = scalar_select 0, %s5, %s3
  $region1: #{poisson_nll_loss.1} parent=0
    #allocation3 [shape = 'u8[512]{0}', space=smem, size = 0x200, scoped, tag = 'output window, operand 0, single buffered']
    #allocation4 [shape = 's32[1]{0}', space=sflag, size = 0x4, scoped, tag = 'scoped memory for poisson_nll_loss.1']
    %7 = vsyncpa [#allocation4], 0
    // Predicated region
    $region2: #{poisson_nll_loss.1} parent=1 // pred_check
      _
    $region3: #{poisson_nll_loss.1} parent=1 // pred_check_branch
      %9 = sbr.rel (0) target = $region5
    $region4: #{poisson_nll_loss.1} parent=1 // pred_region
      %s10 = sadd.s32 0, 0
      %p11 = scmp.lt.s32.totalorder %s10, 0
      %s12 = scalar_select %p11, %s10, 0
      %p13 = scmp.lt.s32.totalorder %s12, 0
      %s14 = scalar_select %p13, %s12, 0
      %s15 = smul.addr %s14, 4
      %s16 = scalar_lea.vmem %s0, %s15
      %s17 = sadd.s32 0, 0
      %p18 = scmp.lt.s32.totalorder %s17, 0
      %s19 = scalar_select %p18, %s17, 0
    $region5: #{poisson_nll_loss.1} parent=1 // pred_fallthru
      _
    // Predicated region
    $region6: #{poisson_nll_loss.1} parent=1 // pred_check
      _
    $region7: #{poisson_nll_loss.1} parent=1 // pred_check_branch
      %21 = sbr.rel (0) target = $region9
    $region8: #{poisson_nll_loss.1} parent=1 // pred_region
      %s22 = sadd.s32 0, 0
      %p23 = scmp.lt.s32.totalorder %s22, 0
      %s24 = scalar_select %p23, %s22, 0
      %p25 = scmp.lt.s32.totalorder %s24, 0
      %s26 = scalar_select %p25, %s24, 0
      %s27 = smul.addr %s26, 4
      %s28 = scalar_lea.vmem %s1, %s27
      %s29 = sadd.s32 0, 0
      %p30 = scmp.lt.s32.totalorder %s29, 0
      %s31 = scalar_select %p30, %s29, 0
    $region9: #{poisson_nll_loss.1} parent=1 // pred_fallthru
      _
    %s32 = sadd.s32 0, 0
    %p33 = scmp.lt.s32.totalorder %s32, 0
    %s34 = scalar_select %p33, %s32, 0
    %p35 = scmp.lt.s32.totalorder %s34, 0
    %s36 = scalar_select %p35, %s34, 0
    %s37 = smul.addr %s36, 4
    %s38 = scalar_lea.vmem %s0, %s37
    %s39 = sadd.s32 0, 0
    %p40 = scmp.lt.s32.totalorder %s39, 0
    %s41 = scalar_select %p40, %s39, 0
    %p42 = scmp.lt.s32.totalorder %s41, 0
    %s43 = scalar_select %p42, %s41, 0
    %s44 = smul.addr %s43, 4
    %s45 = scalar_lea.vmem %s1, %s44
    %s46 = sadd.s32 0, 0
    %p47 = scmp.lt.s32.totalorder %s46, 0
    %s48 = scalar_select %p47, %s46, 0
    %p49 = scmp.lt.s32.totalorder %s48, 0
    %s50 = scalar_select %p49, %s48, 0
    %s51 = smul.addr %s50, 4
    %s52 = scalar_lea.vmem %s0, %s51
    %s53 = sadd.s32 0, 0
    %p54 = scmp.lt.s32.totalorder %s53, 0
    %s55 = scalar_select %p54, %s53, 0
    %s56 = sadd.s32 0, 0
    %p57 = scmp.lt.s32.totalorder %s56, 0
    %s58 = scalar_select %p57, %s56, 0
    %p59 = scmp.lt.s32.totalorder %s58, 0
    %s60 = scalar_select %p59, %s58, 0
    %s61 = smul.addr %s60, 4
    %s62 = scalar_lea.vmem %s1, %s61
    %s63 = sadd.s32 0, 0
    %p64 = scmp.lt.s32.totalorder %s63, 0
    %s65 = scalar_select %p64, %s63, 0
    %p66 = scmp.eq.s32.totalorder 0, 0
    // Predicated region
    $region10: #{poisson_nll_loss.1} parent=1 // pred_check
      %p67 = pneg %p66
    $region11: #{poisson_nll_loss.1} parent=1 // pred_check_branch
      %69 = sbr.rel (%p67) target = $region13
    $region12: #{poisson_nll_loss.1} parent=1 // pred_region
      %v70 = vlaneseq
      %vm71 = vcmp.ge.s32.totalorder %v70, 0
      %vm72 = vcmp.lt.s32.totalorder %v70, 512
      %vm73 = vmand %vm71, %vm72
      %74 = vst.msk [vmem:[#allocation2] sm:$0xf] %vm73, 0.0
    $region13: #{poisson_nll_loss.1} parent=1 // pred_fallthru
      _
    %v75 = vld [vmem:[%s52] sm:$0xf]
    %v76 = vld [vmem:[%s62] sm:$0xf]
    %v77 = vadd.f32 %v75, 1e-08
    %v78 = vlog2.pop %v77
    %v79 = vmul.f32 %v78, 0.6931472
    %v80 = vmul.f32 %v76, %v79
    %v81 = vsub.f32 %v75, %v80
    %s82 = sadd.s32 0, 0
    %s83 = sadd.s32 %s82, 1
    %p84 = scmp.le.s32.totalorder %s83, 1
    // Predicated region
    $region14: #{poisson_nll_loss.1} parent=1 // pred_check
      %p85 = pneg %p84
    $region15: #{poisson_nll_loss.1} parent=1 // pred_check_branch
      %87 = sbr.rel (%p85) target = $region17
    $region16: #{poisson_nll_loss.1} parent=1 // pred_region
      %v88 = vld [vmem:[#allocation2] sm:$0xf]
      %v89 = vadd.f32 %v88, %v81
      %v90 = vlaneseq
      %vm91 = vcmp.ge.s32.totalorder %v90, 0
      %vm92 = vcmp.lt.s32.totalorder %v90, 512
      %vm93 = vmand %vm91, %vm92
      %94 = vst.msk [vmem:[#allocation2] sm:$0xf] %vm93, %v89
    $region17: #{poisson_nll_loss.1} parent=1 // pred_fallthru
      _
    %p95 = scmp.gt.s32.totalorder %s83, 1
    // Predicated region
    $region18: #{poisson_nll_loss.1} parent=1 // pred_check
      %p96 = pneg %p95
    $region19: #{poisson_nll_loss.1} parent=1 // pred_check_branch
      %98 = sbr.rel (%p96) target = $region21
    $region20: #{poisson_nll_loss.1} parent=1 // pred_region
      %v99 = vlaneseq
      %v100 = vshrl.u32 %v99, 7
      %v101 = vstv %s82
      %v102 = vadd.s32 %v100, %v101
      %vm103 = vcmp.lt.s32.totalorder %v102, 1
      %v105 = vlaneseq
      %v106 = vshrl.u32 %v105, 7
      %v107 = vsub.s32 0, %v106
      %v108 = vrot.slane %v81, %v107
      %v109 = vlaneseq
      %v110 = vshrl.u32 %v109, 7
      %v111 = vsub.s32 1, %v110
      %v112 = vrot.slane %v81, %v111
      %v113 = vlaneseq
      %v114 = vshrl.u32 %v113, 7
      %v115 = vsub.s32 2, %v114
      %v116 = vrot.slane %v81, %v115
      %v117 = vlaneseq
      %v118 = vshrl.u32 %v117, 7
      %v119 = vsub.s32 3, %v118
      %v120 = vrot.slane %v81, %v119
      %v125 = vsel %vm103, %v108, 0.0
      %v126 = vsel %vm103, %v112, 0.0
      %v127 = vsel %vm103, %v116, 0.0
      %v128 = vsel %vm103, %v120, 0.0
      %v129 = vld [vmem:[#allocation2] sm:$0xf]
      %v134 = vcombine.low %v125, %v126
      %v135 = vcombine.low %v127, %v128
      %v137 = vunpack.c.l.s4 1966171168
      %v138 = vunpack.c.0.s8 %v137
      %v139 = vlaneseq
      %v140 = vshrl.u32 %v139, 7
      %v141 = vsub.s32 %v138, %v140
      %v142 = vrot.slane %v134, %v141
      %v144 = vunpack.c.l.s4 1966171168
      %v145 = vunpack.c.0.s8 %v144
      %v146 = vlaneseq
      %v147 = vshrl.u32 %v146, 7
      %v148 = vsub.s32 %v145, %v147
      %v149 = vrot.slane %v135, %v148
      %v150 = vcombine.low %v142, %v149
      %v152 = vunpack.c.l.s4 1966171168
      %v153 = vunpack.c.0.s8 %v152
      %v154 = vlaneseq
      %v155 = vshrl.u32 %v154, 7
      %v156 = vsub.s32 %v153, %v155
      %v157 = vrot.slane %v150, %v156
      %v159 = vadd.f32 %v129, %v157
      %v160 = vlaneseq
      %vm161 = vcmp.ge.s32.totalorder %v160, 0
      %vm162 = vcmp.lt.s32.totalorder %v160, 512
      %vm163 = vmand %vm161, %vm162
      %164 = vst.msk [vmem:[#allocation2] sm:$0xf] %vm163, %v159
    $region21: #{poisson_nll_loss.1} parent=1 // pred_fallthru
      _
    // Predicated region
    $region22: #{poisson_nll_loss.1} parent=1 // pred_check
      %p165 = pneg %p66
    $region23: #{poisson_nll_loss.1} parent=1 // pred_check_branch
      %167 = sbr.rel (%p165) target = $region25
    $region24: #{poisson_nll_loss.1} parent=1 // pred_region
      %v168 = vld [vmem:[#allocation2] sm:$0xf]
      %v170 = vlaneseq
      %v171 = vshrl.u32 %v170, 7
      %v172 = vsub.s32 0, %v171
      %v173 = vrot.slane %v168, %v172
      %v174 = vlaneseq
      %v175 = vshrl.u32 %v174, 7
      %v176 = vsub.s32 1, %v175
      %v177 = vrot.slane %v168, %v176
      %v178 = vlaneseq
      %v179 = vshrl.u32 %v178, 7
      %v180 = vsub.s32 2, %v179
      %v181 = vrot.slane %v168, %v180
      %v182 = vlaneseq
      %v183 = vshrl.u32 %v182, 7
      %v184 = vsub.s32 3, %v183
      %v185 = vrot.slane %v168, %v184
      %vm190 = vcmask 1040384
      %v191 = vsel %vm190, %v173, 0.0
      %v192 = vsel %vm190, %v177, 0.0
      %v193 = vadd.f32 %v191, %v192
      %v194 = vsel %vm190, %v181, 0.0
      %v195 = vadd.f32 %v193, %v194
      %v196 = vsel %vm190, %v185, 0.0
      %v197 = vadd.f32 %v195, %v196
      %198 = vadd.xlane.f32.xlu0 %v197
      %v199 = vpop.xlane.xlu0 %198
      %v200 = vrot.slane %v199, 4
      %v201 = vadd.f32 %v199, %v200
      %v202 = vrot.slane %v201, 2
      %v203 = vadd.f32 %v201, %v202
      %v204 = vrot.slane %v203, 1
      %v205 = vadd.f32 %v203, %v204
      %s206 = vtos %v205
      %s207 = scalar_lea.smem [#allocation3], 0
      %208 = sst [smem:[%s207]] %s206
    $region25: #{poisson_nll_loss.1} parent=1 // pred_fallthru
      _
    // Predicated region
    $region26: #{poisson_nll_loss.1} parent=1 // pred_check
      _
    $region27: #{poisson_nll_loss.1} parent=1 // pred_check_branch
      %210 = sbr.rel (0) target = $region29
    $region28: #{poisson_nll_loss.1} parent=1 // pred_region
      %s212 = ssub.s32 16, 16
      %213 = vsyncadd [#allocation4], %s212
      %216 = dma.smem_to_hbm [#allocation3], 16, %s2, [#allocation4]
    $region29: #{poisson_nll_loss.1} parent=1 // pred_fallthru
      _
    // Predicated region
    $region30: #{poisson_nll_loss.1} parent=1 // pred_check
      _
    $region31: #{poisson_nll_loss.1} parent=1 // pred_check_branch
      %218 = sbr.rel (0) target = $region33
    $region32: #{poisson_nll_loss.1} parent=1 // pred_region
      %219 = dma.done [#allocation4], 16
    $region33: #{poisson_nll_loss.1} parent=1 // pred_fallthru
      _
    %220 = sfence
    %221 = vsyncpa [#allocation4], 1

</llo_original>
